<compile_context>
chip_gen: v5e
topology: v5e:2x2
jax: 0.10.0
libtpu: 0.0.40
codegen_flags: <defaults>
</compile_context>

<pallas_src>
import functools

import jax
import jax.numpy as jnp
from jax.experimental import pallas as pl
from jax.experimental.pallas import tpu as pltpu

FEATURES = 32          # LayerNorm(features)
DROPOUT_RATIO = 0.1    # nn.Dropout(p=dropout_ratio), training-mode semantics
LN_EPS = 1e-5          # torch.nn.LayerNorm default eps
LANES = 128            # TPU lane width


def _round_up(x, m):
    return ((x + m - 1) // m) * m


def _sublayer_connect_kernel(dropout_p, features,
                             seed_ref,                     # SMEM scalar prefetch
                             x_ref, w_ref, b_ref, g_ref, gamma_ref, beta_ref,
                             o_ref):
    # x_ref/o_ref: (TM, 128)   w_ref/g_ref: (128, 128)   b/gamma/beta: (1, 128)
    x = x_ref[...]                               # bf16 (or f32), fed to MXU as-is

    # --- sublayer(x): Linear + ReLU; 4 original rows packed per 128-lane row --
    s = jnp.dot(x, w_ref[...], preferred_element_type=jnp.float32) + b_ref[...]
    s = jnp.maximum(s, 0.0)

    # --- Dropout (training semantics): hash-based bits, one compare + select --
    if dropout_p > 0.0:
        tm, lanes = s.shape
        row = jax.lax.broadcasted_iota(jnp.uint32, (tm, lanes), 0)
        col = jax.lax.broadcasted_iota(jnp.uint32, (tm, lanes), 1)
        base = (pl.program_id(0) * tm).astype(jnp.uint32)
        h = (base + row) * jnp.uint32(lanes) + col          # global element id
        h = h * jnp.uint32(0x9E3779B1) + seed_ref[0].astype(jnp.uint32)
        h = h ^ (h >> 16)
        h = h * jnp.uint32(0x85EBCA6B)
        h = h ^ (h >> 13)
        h = h * jnp.uint32(0xC2B2AE35)
        h = h ^ (h >> 16)
        threshold = jnp.uint32(min(int(dropout_p * 4294967296.0), 4294967295))
        keep = h >= threshold                               # P(drop) ~= dropout_p
        s = jnp.where(keep, s * (1.0 / (1.0 - dropout_p)), 0.0)

    # --- residual + LayerNorm per 32-feature group (single-pass variance) -----
    z = x.astype(jnp.float32) + s
    inv_f = 1.0 / features
    mean = jnp.dot(z, g_ref[...], preferred_element_type=jnp.float32) * inv_f
    meansq = jnp.dot(z * z, g_ref[...], preferred_element_type=jnp.float32) * inv_f
    var = meansq - mean * mean
    y = (z - mean) * jax.lax.rsqrt(var + LN_EPS)
    o_ref[...] = (y * gamma_ref[...] + beta_ref[...]).astype(o_ref.dtype)


def sublayer_connect(x, w, b, gamma, beta, seed, *,
                     dropout_p=DROPOUT_RATIO, tile_packed_rows=1024):
    """x: [batch, seq, features] -> [batch, seq, features] (same dtype as x)."""
    B, S, F = x.shape
    assert LANES % F == 0, "features must divide 128 for lane packing"
    pack = LANES // F                      # original rows per 128-lane packed row
    N = B * S

    # Lane-dense repack: row-major [N, F] is bit-identical to [N/pack, 128].
    n_pk = -(-N // pack)
    tm = min(tile_packed_rows, _round_up(n_pk, 8))   # packed rows per tile (x8)
    n_pk_pad = _round_up(n_pk, tm)
    n_pad = n_pk_pad * pack

    x2d = x.reshape(N, F)
    if n_pad != N:
        x2d = jnp.pad(x2d, ((0, n_pad - N), (0, 0)))
    x128 = x2d.reshape(n_pk_pad, LANES)

    # Lane-dense parameters (tiny; built once in the wrapper).
    dt = x.dtype
    eye = jnp.eye(pack, dtype=jnp.float32)
    w128 = jnp.kron(eye, w.astype(jnp.float32)).astype(dt)       # block-diag Linear
    g128 = jnp.kron(eye, jnp.ones((F, F), jnp.float32))          # segment-sum matrix
    b128 = jnp.tile(b.reshape(1, F).astype(jnp.float32), (1, pack))
    gamma128 = jnp.tile(gamma.reshape(1, F).astype(jnp.float32), (1, pack))
    beta128 = jnp.tile(beta.reshape(1, F).astype(jnp.float32), (1, pack))

    kernel = functools.partial(_sublayer_connect_kernel, float(dropout_p), F)

    out128 = pl.pallas_call(
        kernel,
        out_shape=jax.ShapeDtypeStruct((n_pk_pad, LANES), dt),
        grid_spec=pltpu.PrefetchScalarGridSpec(
            num_scalar_prefetch=1,
            grid=(n_pk_pad // tm,),
            in_specs=[
                pl.BlockSpec((tm, LANES), lambda i, seed: (i, 0)),      # x tiles
                pl.BlockSpec((LANES, LANES), lambda i, seed: (0, 0)),   # W block-diag
                pl.BlockSpec((1, LANES), lambda i, seed: (0, 0)),       # bias
                pl.BlockSpec((LANES, LANES), lambda i, seed: (0, 0)),   # segment-sum
                pl.BlockSpec((1, LANES), lambda i, seed: (0, 0)),       # ln gamma
                pl.BlockSpec((1, LANES), lambda i, seed: (0, 0)),       # ln beta
            ],
            out_specs=pl.BlockSpec((tm, LANES), lambda i, seed: (i, 0)),
        ),
        compiler_params=pltpu.CompilerParams(
            dimension_semantics=("parallel",),        # megacore sharding on v7x
            vmem_limit_bytes=32 * 1024 * 1024,        # budget against v7x 64 MiB VMEM
        ),
    )(seed, x128, w128, b128, g128, gamma128, beta128)

    out2d = out128.reshape(n_pad, F)[:N]
    return out2d.reshape(B, S, F)


if __name__ == "__main__":
    key = jax.random.PRNGKey(0)
    k_x, k_w, k_b = jax.random.split(key, 3)

    batch, seq, features = 2, 8, FEATURES

    # bf16 I/O (the kernel is HBM-bandwidth bound); LN affine params stay f32.
    x = jax.random.normal(k_x, (batch, seq, features), dtype=jnp.float32).astype(jnp.bfloat16)
    w = (jax.random.normal(k_w, (features, features), dtype=jnp.float32) * 0.05).astype(jnp.bfloat16)
    b = (jax.random.normal(k_b, (1, features), dtype=jnp.float32) * 0.01).astype(jnp.bfloat16)
    gamma = jnp.ones((1, features), dtype=jnp.float32)   # nn.LayerNorm weight
    beta = jnp.zeros((1, features), dtype=jnp.float32)   # nn.LayerNorm bias
    seed = jnp.array([1234], dtype=jnp.int32)

    # Training-mode forward (dropout active).
    y = sublayer_connect(x, w, b, gamma, beta, seed)
    jax.block_until_ready(y)
    assert y.shape == (batch, seq, features) and y.dtype == x.dtype

    # Eval-mode (p=0) check against a pure-JAX reference of the same math.
    y0 = sublayer_connect(x, w, b, gamma, beta, seed, dropout_p=0.0).astype(jnp.float32)
    xf = x.astype(jnp.float32)
    sf = jnp.maximum(jnp.einsum("bsf,fg->bsg", xf, w.astype(jnp.float32))
                     + b.astype(jnp.float32), 0.0)
    zf = xf + sf
    mu = zf.mean(-1, keepdims=True)
    var = ((zf - mu) ** 2).mean(-1, keepdims=True)
    ref = (zf - mu) * jax.lax.rsqrt(var + LN_EPS) * gamma + beta
    assert jnp.allclose(y0, ref, atol=1e-1, rtol=1e-1), float(jnp.max(jnp.abs(y0 - ref)))

    print("KERNEL_OK")
</pallas_src>

<mosaic_0001>
module attributes {stable_mosaic.version = 11 : i64} {
  func.func @_sublayer_connect_kernel(%arg0: i32, %arg1: memref<1xi32, #tpu.memory_space<smem>>, %arg2: memref<8x128xbf16, #tpu.memory_space<vmem>>, %arg3: memref<128x128xbf16, #tpu.memory_space<vmem>>, %arg4: memref<1x128xf32, #tpu.memory_space<vmem>>, %arg5: memref<128x128xf32, #tpu.memory_space<vmem>>, %arg6: memref<1x128xf32, #tpu.memory_space<vmem>>, %arg7: memref<1x128xf32, #tpu.memory_space<vmem>>, %arg8: memref<8x128xbf16, #tpu.memory_space<vmem>>) attributes {dimension_semantics = [#tpu.dimension_semantics<parallel>], iteration_bounds = array<i64: 1>, scalar_prefetch = 1 : i64, scratch_operands = 0 : i64, tpu.core_type = #tpu.core_type<tc>, window_params = [{transform_indices = @transform_0, window_bounds = array<i64: 8, 128>}, {pipeline_mode = #tpu.pipeline_mode<synchronous>, transform_indices = @transform_1, window_bounds = array<i64: 128, 128>}, {pipeline_mode = #tpu.pipeline_mode<synchronous>, transform_indices = @transform_2, window_bounds = array<i64: 1, 128>}, {pipeline_mode = #tpu.pipeline_mode<synchronous>, transform_indices = @transform_3, window_bounds = array<i64: 128, 128>}, {pipeline_mode = #tpu.pipeline_mode<synchronous>, transform_indices = @transform_4, window_bounds = array<i64: 1, 128>}, {pipeline_mode = #tpu.pipeline_mode<synchronous>, transform_indices = @transform_5, window_bounds = array<i64: 1, 128>}, {transform_indices = @transform_6, window_bounds = array<i64: 8, 128>}]} {
    %c0 = arith.constant 0 : index
    %c0_0 = arith.constant 0 : index
    %0 = vector.load %arg2[%c0, %c0_0] : memref<8x128xbf16, #tpu.memory_space<vmem>>, vector<8x128xbf16>
    %c0_1 = arith.constant 0 : index
    %c0_2 = arith.constant 0 : index
    %1 = vector.load %arg3[%c0_1, %c0_2] : memref<128x128xbf16, #tpu.memory_space<vmem>>, vector<128x128xbf16>
    %cst = arith.constant dense<0.000000e+00> : vector<8x128xf32>
    %2 = tpu.matmul %0, %1, %cst {dimension_numbers = #tpu.dot_dimension_numbers<[1], [0], [0], [1], [0, 0, 1, 1], [], []>} : vector<8x128xbf16>, vector<128x128xbf16>, vector<8x128xf32> -> vector<8x128xf32>
    %c0_3 = arith.constant 0 : index
    %c0_4 = arith.constant 0 : index
    %3 = vector.load %arg4[%c0_3, %c0_4] : memref<1x128xf32, #tpu.memory_space<vmem>>, vector<1x128xf32>
    %4 = vector.broadcast %3 : vector<1x128xf32> to vector<8x128xf32>
    %5 = arith.addf %2, %4 : vector<8x128xf32>
    %cst_5 = arith.constant 0.000000e+00 : f32
    %6 = vector.broadcast %cst_5 : f32 to vector<8x128xf32>
    %7 = arith.maximumf %5, %6 : vector<8x128xf32>
    %8 = tpu.iota {dimensions = array<i32: 0>} : vector<8x128xi32>
    %9 = tpu.iota {dimensions = array<i32: 1>} : vector<8x128xi32>
    %c8_i32 = arith.constant 8 : i32
    %10 = arith.muli %arg0, %c8_i32 : i32
    %11 = vector.broadcast %10 : i32 to vector<8x128xi32>
    %12 = arith.addi %11, %8 : vector<8x128xi32>
    %c128_i32 = arith.constant 128 : i32
    %13 = vector.broadcast %c128_i32 : i32 to vector<8x128xi32>
    %14 = arith.muli %12, %13 : vector<8x128xi32>
    %15 = arith.addi %14, %9 : vector<8x128xi32>
    %c-1640531535_i32 = arith.constant -1640531535 : i32
    %16 = vector.broadcast %c-1640531535_i32 : i32 to vector<8x128xi32>
    %17 = arith.muli %15, %16 : vector<8x128xi32>
    %c0_6 = arith.constant 0 : index
    %18 = memref.load %arg1[%c0_6] : memref<1xi32, #tpu.memory_space<smem>>
    %19 = vector.broadcast %18 : i32 to vector<8x128xi32>
    %20 = arith.addi %17, %19 : vector<8x128xi32>
    %c16_i32 = arith.constant 16 : i32
    %21 = vector.broadcast %c16_i32 : i32 to vector<8x128xi32>
    %22 = arith.shrui %20, %21 : vector<8x128xi32>
    %23 = arith.xori %20, %22 : vector<8x128xi32>
    %c-2048144789_i32 = arith.constant -2048144789 : i32
    %24 = vector.broadcast %c-2048144789_i32 : i32 to vector<8x128xi32>
    %25 = arith.muli %23, %24 : vector<8x128xi32>
    %c13_i32 = arith.constant 13 : i32
    %26 = vector.broadcast %c13_i32 : i32 to vector<8x128xi32>
    %27 = arith.shrui %25, %26 : vector<8x128xi32>
    %28 = arith.xori %25, %27 : vector<8x128xi32>
    %c-1028477387_i32 = arith.constant -1028477387 : i32
    %29 = vector.broadcast %c-1028477387_i32 : i32 to vector<8x128xi32>
    %30 = arith.muli %28, %29 : vector<8x128xi32>
    %c16_i32_7 = arith.constant 16 : i32
    %31 = vector.broadcast %c16_i32_7 : i32 to vector<8x128xi32>
    %32 = arith.shrui %30, %31 : vector<8x128xi32>
    %33 = arith.xori %30, %32 : vector<8x128xi32>
    %c429496729_i32 = arith.constant 429496729 : i32
    %34 = vector.broadcast %c429496729_i32 : i32 to vector<8x128xi32>
    %35 = arith.cmpi uge, %33, %34 : vector<8x128xi32>
    %cst_8 = arith.constant 1.11111116 : f32
    %36 = vector.broadcast %cst_8 : f32 to vector<8x128xf32>
    %37 = arith.mulf %7, %36 : vector<8x128xf32>
    %cst_9 = arith.constant 0.000000e+00 : f32
    %38 = vector.broadcast %cst_9 : f32 to vector<8x128xf32>
    %39 = arith.select %35, %37, %38 : vector<8x128xi1>, vector<8x128xf32>
    %40 = arith.extf %0 : vector<8x128xbf16> to vector<8x128xf32>
    %41 = arith.addf %40, %39 : vector<8x128xf32>
    %c0_10 = arith.constant 0 : index
    %c0_11 = arith.constant 0 : index
    %42 = vector.load %arg5[%c0_10, %c0_11] : memref<128x128xf32, #tpu.memory_space<vmem>>, vector<128x128xf32>
    %cst_12 = arith.constant dense<0.000000e+00> : vector<8x128xf32>
    %43 = tpu.matmul %41, %42, %cst_12 {dimension_numbers = #tpu.dot_dimension_numbers<[1], [0], [0], [1], [0, 0, 1, 1], [], []>} : vector<8x128xf32>, vector<128x128xf32>, vector<8x128xf32> -> vector<8x128xf32>
    %cst_13 = arith.constant 3.125000e-02 : f32
    %44 = vector.broadcast %cst_13 : f32 to vector<8x128xf32>
    %45 = arith.mulf %43, %44 : vector<8x128xf32>
    %46 = arith.mulf %41, %41 : vector<8x128xf32>
    %c0_14 = arith.constant 0 : index
    %c0_15 = arith.constant 0 : index
    %47 = vector.load %arg5[%c0_14, %c0_15] : memref<128x128xf32, #tpu.memory_space<vmem>>, vector<128x128xf32>
    %cst_16 = arith.constant dense<0.000000e+00> : vector<8x128xf32>
    %48 = tpu.matmul %46, %47, %cst_16 {dimension_numbers = #tpu.dot_dimension_numbers<[1], [0], [0], [1], [0, 0, 1, 1], [], []>} : vector<8x128xf32>, vector<128x128xf32>, vector<8x128xf32> -> vector<8x128xf32>
    %cst_17 = arith.constant 3.125000e-02 : f32
    %49 = vector.broadcast %cst_17 : f32 to vector<8x128xf32>
    %50 = arith.mulf %48, %49 : vector<8x128xf32>
    %51 = arith.mulf %45, %45 : vector<8x128xf32>
    %52 = arith.subf %50, %51 : vector<8x128xf32>
    %53 = arith.subf %41, %45 : vector<8x128xf32>
    %cst_18 = arith.constant 9.99999974E-6 : f32
    %54 = vector.broadcast %cst_18 : f32 to vector<8x128xf32>
    %55 = arith.addf %52, %54 : vector<8x128xf32>
    %56 = math.rsqrt %55 : vector<8x128xf32>
    %57 = arith.mulf %53, %56 : vector<8x128xf32>
    %c0_19 = arith.constant 0 : index
    %c0_20 = arith.constant 0 : index
    %58 = vector.load %arg6[%c0_19, %c0_20] : memref<1x128xf32, #tpu.memory_space<vmem>>, vector<1x128xf32>
    %59 = vector.broadcast %58 : vector<1x128xf32> to vector<8x128xf32>
    %60 = arith.mulf %57, %59 : vector<8x128xf32>
    %c0_21 = arith.constant 0 : index
    %c0_22 = arith.constant 0 : index
    %61 = vector.load %arg7[%c0_21, %c0_22] : memref<1x128xf32, #tpu.memory_space<vmem>>, vector<1x128xf32>
    %62 = vector.broadcast %61 : vector<1x128xf32> to vector<8x128xf32>
    %63 = arith.addf %60, %62 : vector<8x128xf32>
    %64 = arith.truncf %63 : vector<8x128xf32> to vector<8x128xbf16>
    %c0_23 = arith.constant 0 : index
    %c0_24 = arith.constant 0 : index
    %65 = vector.load %arg8[%c0_23, %c0_24] : memref<8x128xbf16, #tpu.memory_space<vmem>>, vector<8x128xbf16>
    tpu.vector_store %arg8[%c0_23, %c0_24], %64 {strides = array<i32>} : memref<8x128xbf16, #tpu.memory_space<vmem>>, vector<8x128xbf16>,
    return
  }
  func.func @transform_0(%arg0: i32, %arg1: memref<1xi32, #tpu.memory_space<smem>>) -> (i32, i32) {
    %c0_i32 = arith.constant 0 : i32
    %c0_i32_0 = arith.constant 0 : i32
    return %arg0, %c0_i32 : i32, i32
  }
  func.func @transform_1(%arg0: i32, %arg1: memref<1xi32, #tpu.memory_space<smem>>) -> (i32, i32) {
    %c0_i32 = arith.constant 0 : i32
    %c0_i32_0 = arith.constant 0 : i32
    %c0_i32_1 = arith.constant 0 : i32
    return %c0_i32, %c0_i32_0 : i32, i32
  }
  func.func @transform_2(%arg0: i32, %arg1: memref<1xi32, #tpu.memory_space<smem>>) -> (i32, i32) {
    %c0_i32 = arith.constant 0 : i32
    %c0_i32_0 = arith.constant 0 : i32
    %c0_i32_1 = arith.constant 0 : i32
    return %c0_i32, %c0_i32_0 : i32, i32
  }
  func.func @transform_3(%arg0: i32, %arg1: memref<1xi32, #tpu.memory_space<smem>>) -> (i32, i32) {
    %c0_i32 = arith.constant 0 : i32
    %c0_i32_0 = arith.constant 0 : i32
    %c0_i32_1 = arith.constant 0 : i32
    return %c0_i32, %c0_i32_0 : i32, i32
  }
  func.func @transform_4(%arg0: i32, %arg1: memref<1xi32, #tpu.memory_space<smem>>) -> (i32, i32) {
    %c0_i32 = arith.constant 0 : i32
    %c0_i32_0 = arith.constant 0 : i32
    %c0_i32_1 = arith.constant 0 : i32
    return %c0_i32, %c0_i32_0 : i32, i32
  }
  func.func @transform_5(%arg0: i32, %arg1: memref<1xi32, #tpu.memory_space<smem>>) -> (i32, i32) {
    %c0_i32 = arith.constant 0 : i32
    %c0_i32_0 = arith.constant 0 : i32
    %c0_i32_1 = arith.constant 0 : i32
    return %c0_i32, %c0_i32_0 : i32, i32
  }
  func.func @transform_6(%arg0: i32, %arg1: memref<1xi32, #tpu.memory_space<smem>>) -> (i32, i32) {
    %c0_i32 = arith.constant 0 : i32
    %c0_i32_0 = arith.constant 0 : i32
    return %arg0, %c0_i32 : i32, i32
  }
}

</mosaic_0001>

<llo_original>
// kernel: tpu_custom_call.1
$region0: #{tpu_custom_call.1}
  #allocation0 [shape = 'u32[]', space=smem, size = 0x4, offset = 0x4, fixed_abs, tag = 'smem constant byte address 0x4 - core index']
  #allocation1 [shape = 'u32[72,128]{1,0:T(1,128)}', space=vmem, size = 0x9000, scoped, tag = 'internal scratch']
  #allocation2 [shape = 's32[1]{0}', space=sflag, size = 0x4, scoped, tag = 'scoped memory for tpu_custom_call.1']
  #allocation3 [shape = 's32[1]{0:T(128)S(6)}', space=smem, size = 0x200, scoped, tag = 'prefetched SMEM operand 0']
  %s0 = inlined_call_operand.<no memory space> [shape: s32[1], index: 0, kind: input, shape index: {}]
  %s1 = inlined_call_operand.hbm [shape: bf16[8,128], index: 1, kind: input, shape index: {}]
  %s2 = inlined_call_operand.hbm [shape: bf16[128,128], index: 2, kind: input, shape index: {}]
  %s3 = inlined_call_operand.vmem [shape: f32[1,128], index: 3, kind: input, shape index: {}]
  %s4 = inlined_call_operand.hbm [shape: f32[128,128], index: 4, kind: input, shape index: {}]
  %s5 = inlined_call_operand.vmem [shape: f32[1,128], index: 5, kind: input, shape index: {}]
  %s6 = inlined_call_operand.vmem [shape: f32[1,128], index: 6, kind: input, shape index: {}]
  %s7 = inlined_call_operand.hbm [shape: bf16[8,128], index: 7, kind: output, shape index: {}]
  %s8 = sld [smem:[#allocation0]]
  $region46: #{tpu_custom_call.1} parent=0
    _
  %s10 = ssub.s32 1, %s8
  %s11 = scalar_select 0, %s10, %s8
  %12 = sst [smem:[#allocation3]] %s0
  $region1: #{tpu_custom_call.1} parent=0
    #allocation4 [shape = 'u8[2048]{0}', space=vmem, size = 0x800, scoped, tag = 'input window, operand 1, single buffered']
    #allocation5 [shape = 's32[1]{0}', space=sflag, size = 0x4, scoped, tag = 'scoped memory for tpu_custom_call.1']
    #allocation6 [shape = 's32[1]{0}', space=sflag, size = 0x4, scoped, tag = 'scoped memory for tpu_custom_call.1']
    #allocation7 [shape = 'u8[32768]{0}', space=vmem, size = 0x8000, scoped, tag = 'input window, operand 2, single buffered']
    #allocation8 [shape = 's32[1]{0}', space=sflag, size = 0x4, scoped, tag = 'scoped memory for tpu_custom_call.1']
    #allocation9 [shape = 'u8[65536]{0}', space=vmem, size = 0x10000, scoped, tag = 'input window, operand 4, single buffered']
    #allocation10 [shape = 'u8[2048]{0}', space=vmem, size = 0x800, scoped, tag = 'output window, operand 0, single buffered']
    %13 = vsyncpa [#allocation5], 0
    %14 = vsyncpa [#allocation8], 0
    %15 = vsyncpa [#allocation6], 0
    // Predicated region
    $region2: #{tpu_custom_call.1} parent=1 // pred_check
      _
    $region3: #{tpu_custom_call.1} parent=1 // pred_check_branch
      %17 = sbr.rel (0) target = $region5
    $region4: #{tpu_custom_call.1} parent=1 // pred_region
      %19 = vsyncadd [#allocation5], 0
      %s21 = sshll.u32 %s1, 4
      %s22 = int_to_ptr.hbm [resolvable:$true] %s21
      %s23 = sshll.u32 [#allocation4], 4
      %s24 = int_to_ptr.vmem [resolvable:$true] %s23
      %26 = dma.hbm_to_vmem [thread:$0]  %s22, 64, %s24, [#allocation5]
    $region5: #{tpu_custom_call.1} parent=1 // pred_fallthru
      _
    // Predicated region
    $region6: #{tpu_custom_call.1} parent=1 // pred_check
      _
    $region7: #{tpu_custom_call.1} parent=1 // pred_check_branch
      %28 = sbr.rel (0) target = $region9
    $region8: #{tpu_custom_call.1} parent=1 // pred_region
      %30 = vsyncadd [#allocation8], 0
      %s31 = sshll.u32 %s2, 4
      %s32 = int_to_ptr.hbm [resolvable:$true] %s31
      %s33 = sshll.u32 [#allocation7], 4
      %s34 = int_to_ptr.vmem [resolvable:$true] %s33
      %39 = dma.hbm_to_vmem [thread:$0]  %s32, 1024, %s34, [#allocation8], 64, 64, 4
    $region9: #{tpu_custom_call.1} parent=1 // pred_fallthru
      _
    // Predicated region
    $region10: #{tpu_custom_call.1} parent=1 // pred_check
      _
    $region11: #{tpu_custom_call.1} parent=1 // pred_check_branch
      %41 = sbr.rel (0) target = $region13
    $region12: #{tpu_custom_call.1} parent=1 // pred_region
      _
    $region13: #{tpu_custom_call.1} parent=1 // pred_fallthru
      _
    // Predicated region
    $region14: #{tpu_custom_call.1} parent=1 // pred_check
      _
    $region15: #{tpu_custom_call.1} parent=1 // pred_check_branch
      %43 = sbr.rel (0) target = $region17
    $region16: #{tpu_custom_call.1} parent=1 // pred_region
      %45 = vsyncadd [#allocation8], 0
      %s46 = sshll.u32 %s4, 4
      %s47 = int_to_ptr.hbm [resolvable:$true] %s46
      %s48 = sshll.u32 [#allocation9], 4
      %s49 = int_to_ptr.vmem [resolvable:$true] %s48
      %54 = dma.hbm_to_vmem [thread:$0]  %s47, 2048, %s49, [#allocation8], 128, 128, 8
    $region17: #{tpu_custom_call.1} parent=1 // pred_fallthru
      _
    // Predicated region
    $region18: #{tpu_custom_call.1} parent=1 // pred_check
      _
    $region19: #{tpu_custom_call.1} parent=1 // pred_check_branch
      %56 = sbr.rel (0) target = $region21
    $region20: #{tpu_custom_call.1} parent=1 // pred_region
      _
    $region21: #{tpu_custom_call.1} parent=1 // pred_fallthru
      _
    // Predicated region
    $region22: #{tpu_custom_call.1} parent=1 // pred_check
      _
    $region23: #{tpu_custom_call.1} parent=1 // pred_check_branch
      %58 = sbr.rel (0) target = $region25
    $region24: #{tpu_custom_call.1} parent=1 // pred_region
      _
    $region25: #{tpu_custom_call.1} parent=1 // pred_fallthru
      _
    // Predicated region
    $region26: #{tpu_custom_call.1} parent=1 // pred_check
      _
    $region27: #{tpu_custom_call.1} parent=1 // pred_check_branch
      %60 = sbr.rel (0) target = $region29
    $region28: #{tpu_custom_call.1} parent=1 // pred_region
      %62 = dma.done [#allocation5], 64
    $region29: #{tpu_custom_call.1} parent=1 // pred_fallthru
      _
    // Predicated region
    $region30: #{tpu_custom_call.1} parent=1 // pred_check
      _
    $region31: #{tpu_custom_call.1} parent=1 // pred_check_branch
      %64 = sbr.rel (0) target = $region33
    $region32: #{tpu_custom_call.1} parent=1 // pred_region
      %66 = dma.done [#allocation8], 1024
    $region33: #{tpu_custom_call.1} parent=1 // pred_fallthru
      _
    // Predicated region
    $region34: #{tpu_custom_call.1} parent=1 // pred_check
      _
    $region35: #{tpu_custom_call.1} parent=1 // pred_check_branch
      %68 = sbr.rel (0) target = $region37
    $region36: #{tpu_custom_call.1} parent=1 // pred_region
      %70 = dma.done [#allocation8], 2048
    $region37: #{tpu_custom_call.1} parent=1 // pred_fallthru
      _
    %v71 = vld [vmem:[#allocation4] sm:$0xf]
    %v72 = vld [vmem:[#allocation7] sm:$0xf]
    %v73 = vld [vmem:[#allocation7 + $0x4] sm:$0xf]
    %v74 = vld [vmem:[#allocation7 + $0x8] sm:$0xf]
    %v75 = vld [vmem:[#allocation7 + $0xc] sm:$0xf]
    %v76 = vld [vmem:[#allocation7 + $0x10] sm:$0xf]
    %v77 = vld [vmem:[#allocation7 + $0x14] sm:$0xf]
    %v78 = vld [vmem:[#allocation7 + $0x18] sm:$0xf]
    %v79 = vld [vmem:[#allocation7 + $0x1c] sm:$0xf]
    %v80 = vld [vmem:[#allocation7 + $0x20] sm:$0xf]
    %v81 = vld [vmem:[#allocation7 + $0x24] sm:$0xf]
    %v82 = vld [vmem:[#allocation7 + $0x28] sm:$0xf]
    %v83 = vld [vmem:[#allocation7 + $0x2c] sm:$0xf]
    %v84 = vld [vmem:[#allocation7 + $0x30] sm:$0xf]
    %v85 = vld [vmem:[#allocation7 + $0x34] sm:$0xf]
    %v86 = vld [vmem:[#allocation7 + $0x38] sm:$0xf]
    %v87 = vld [vmem:[#allocation7 + $0x3c] sm:$0xf]
    %v88 = vld [vmem:[%s3] sm:$0x1]
    %v90 = vperm.slane %v88, 0
    %v108 = vunpack.c.l.b16 %v72
    %v109 = vunpack.c.l.b16 %v73
    %v110 = vunpack.c.l.b16 %v74
    %v111 = vunpack.c.l.b16 %v75
    %v112 = vunpack.c.l.b16 %v76
    %v113 = vunpack.c.l.b16 %v77
    %v114 = vunpack.c.l.b16 %v78
    %v115 = vunpack.c.l.b16 %v79
    %v116 = vunpack.c.l.b16 %v80
    %v117 = vunpack.c.l.b16 %v81
    %v118 = vunpack.c.l.b16 %v82
    %v119 = vunpack.c.l.b16 %v83
    %v120 = vunpack.c.l.b16 %v84
    %v121 = vunpack.c.l.b16 %v85
    %v122 = vunpack.c.l.b16 %v86
    %v123 = vunpack.c.l.b16 %v87
    %v124 = vpack.c.b16 %v109, %v108
    %v125 = vpack.c.b16 %v111, %v110
    %v126 = vpack.c.b16 %v113, %v112
    %v127 = vpack.c.b16 %v115, %v114
    %v128 = vpack.c.b16 %v117, %v116
    %v129 = vpack.c.b16 %v119, %v118
    %v130 = vpack.c.b16 %v121, %v120
    %v131 = vpack.c.b16 %v123, %v122
    %140 = vmatpush.bf16.msra.mxu0 %v131
    %141 = vmatpush.bf16.msra.mxu0 %v130
    %142 = vmatpush.bf16.msra.mxu0 %v129
    %143 = vmatpush.bf16.msra.mxu0 %v128
    %144 = vmatpush.bf16.msra.mxu0 %v127
    %145 = vmatpush.bf16.msra.mxu0 %v126
    %146 = vmatpush.bf16.msra.mxu0 %v125
    %147 = vmatpush.bf16.msra.mxu0 %v124
    %148 = vmatmul.bf16.gmra.mxu0 %v71
    %v149 = vpop.f32.mrf.mxu0
    %v150 = vadd.f32 %v90, %v149
    %v151 = vpop.f32.mrf.mxu0
    %152 = vdwg.mxu0
    %v153 = vmax.f32 %v150, 0.0
    %v154 = vlaneseq
    %v155 = vshrl.u32 %v154, 7
    %v156 = vlaneseq
    %v157 = vand.u32 %v156, 127
    %s158 = smul.u32 0, 8
    %v159 = vstv %s158
    %v160 = vadd.s32 %v159, %v155
    %v161 = vmul.u32 %v160, 128
    %v162 = vadd.s32 %v161, %v157
    %v163 = vmul.u32 %v162, 2654435761
    %s164 = sld [smem:[#allocation3]]
    %v165 = vstv %s164
    %v166 = vadd.s32 %v163, %v165
    %v167 = vshrl.u32 %v166, 16
    %v168 = vxor.u32 %v166, %v167
    %v169 = vmul.u32 %v168, 2246822507
    %v170 = vshrl.u32 %v169, 13
    %v171 = vxor.u32 %v169, %v170
    %v172 = vmul.u32 %v171, 3266489909
    %v173 = vshrl.u32 %v172, 16
    %v174 = vxor.u32 %v172, %v173
    %v175 = vadd.s32 %v174, 2147483648
    %vm177 = vcmp.ge.s32.totalorder %v175, 2576980377
    %v178 = vmul.f32 %v153, 1.1111112
    %v179 = vsel %vm177, %v178, 0.0
    %v180 = vunpack.c.l.bf16 %v71
    %v181 = vadd.f32 %v180, %v179
    %v182 = vld [vmem:[#allocation9] sm:$0xff]
    %v183 = vld [vmem:[#allocation9 + $0x8] sm:$0xff]
    %v184 = vld [vmem:[#allocation9 + $0x10] sm:$0xff]
    %v185 = vld [vmem:[#allocation9 + $0x18] sm:$0xff]
    %v186 = vld [vmem:[#allocation9 + $0x20] sm:$0xff]
    %v187 = vld [vmem:[#allocation9 + $0x28] sm:$0xff]
    %v188 = vld [vmem:[#allocation9 + $0x30] sm:$0xff]
    %v189 = vld [vmem:[#allocation9 + $0x38] sm:$0xff]
    %v190 = vld [vmem:[#allocation9 + $0x40] sm:$0xff]
    %v191 = vld [vmem:[#allocation9 + $0x48] sm:$0xff]
    %v192 = vld [vmem:[#allocation9 + $0x50] sm:$0xff]
    %v193 = vld [vmem:[#allocation9 + $0x58] sm:$0xff]
    %v194 = vld [vmem:[#allocation9 + $0x60] sm:$0xff]
    %v195 = vld [vmem:[#allocation9 + $0x68] sm:$0xff]
    %v196 = vld [vmem:[#allocation9 + $0x70] sm:$0xff]
    %v197 = vld [vmem:[#allocation9 + $0x78] sm:$0xff]
    %198 = vmatpush.msra.mxu0 %v197
    %199 = vmatpush.msra.mxu0 %v196
    %200 = vmatpush.msra.mxu0 %v195
    %201 = vmatpush.msra.mxu0 %v194
    %202 = vmatpush.msra.mxu0 %v193
    %203 = vmatpush.msra.mxu0 %v192
    %204 = vmatpush.msra.mxu0 %v191
    %205 = vmatpush.msra.mxu0 %v190
    %206 = vmatpush.msra.mxu0 %v189
    %207 = vmatpush.msra.mxu0 %v188
    %208 = vmatpush.msra.mxu0 %v187
    %209 = vmatpush.msra.mxu0 %v186
    %210 = vmatpush.msra.mxu0 %v185
    %211 = vmatpush.msra.mxu0 %v184
    %212 = vmatpush.msra.mxu0 %v183
    %213 = vmatpush.msra.mxu0 %v182
    %214 = vmatmul.f32.gmra.mxu0 %v181
    %v215 = vpop.f32.mrf.mxu0
    %v216 = vadd.f32 0.0, %v215
    %217 = vdwg.mxu0
    %v218 = vmul.f32 %v216, 0.03125
    %v219 = vmul.f32 %v181, %v181
    %220 = vmatpush.msra.mxu0 %v197
    %221 = vmatpush.msra.mxu0 %v196
    %222 = vmatpush.msra.mxu0 %v195
    %223 = vmatpush.msra.mxu0 %v194
    %224 = vmatpush.msra.mxu0 %v193
    %225 = vmatpush.msra.mxu0 %v192
    %226 = vmatpush.msra.mxu0 %v191
    %227 = vmatpush.msra.mxu0 %v190
    %228 = vmatpush.msra.mxu0 %v189
    %229 = vmatpush.msra.mxu0 %v188
    %230 = vmatpush.msra.mxu0 %v187
    %231 = vmatpush.msra.mxu0 %v186
    %232 = vmatpush.msra.mxu0 %v185
    %233 = vmatpush.msra.mxu0 %v184
    %234 = vmatpush.msra.mxu0 %v183
    %235 = vmatpush.msra.mxu0 %v182
    %236 = vmatmul.f32.gmra.mxu0 %v219
    %v237 = vpop.f32.mrf.mxu0
    %v238 = vadd.f32 0.0, %v237
    %239 = vdwg.mxu0
    %v240 = vmul.f32 %v238, 0.03125
    %v241 = vmul.f32 %v218, %v218
    %v242 = vsub.f32 %v240, %v241
    %v243 = vsub.f32 %v181, %v218
    %v244 = vadd.f32 %v242, 1e-05
    %v245 = vrsqrt.pop %v244
    %v246 = vmul.f32 %v245, %v244
    %v247 = vmul.f32 %v246, %v245
    %v248 = vmul.f32 0.5, %v247
    %v249 = vsub.f32 1.5, %v248
    %v250 = vmul.f32 %v245, %v249
    %vm251 = vweird.f32 %v244
    %vm252 = vweird.f32 %v245
    %vm253 = vmor %vm251, %vm252
    %v254 = vsel %vm253, %v245, %v250
    %v255 = vmul.f32 %v243, %v254
    %v256 = vld [vmem:[%s5] sm:$0x1]
    %v258 = vperm.slane %v256, 0
    %v260 = vmul.f32 %v255, %v258
    %v261 = vld [vmem:[%s6] sm:$0x1]
    %v263 = vperm.slane %v261, 0
    %v265 = vadd.f32 %v260, %v263
    %v266 = vpack.c.bf16 %v265, %v265
    %267 = vst [vmem:[#allocation10] sm:$0xf] %v266
    // Predicated region
    $region38: #{tpu_custom_call.1} parent=1 // pred_check
      _
    $region39: #{tpu_custom_call.1} parent=1 // pred_check_branch
      %269 = sbr.rel (0) target = $region41
    $region40: #{tpu_custom_call.1} parent=1 // pred_region
      %271 = vsyncadd [#allocation6], 0
      %s273 = sshll.u32 [#allocation10], 4
      %s274 = int_to_ptr.vmem [resolvable:$true] %s273
      %s275 = sshll.u32 %s7, 4
      %s276 = int_to_ptr.hbm [resolvable:$true] %s275
      %278 = dma.vmem_to_hbm [thread:$0]  %s274, 64, %s276, [#allocation6]
    $region41: #{tpu_custom_call.1} parent=1 // pred_fallthru
      _
    // Predicated region
    $region42: #{tpu_custom_call.1} parent=1 // pred_check
      _
    $region43: #{tpu_custom_call.1} parent=1 // pred_check_branch
      %280 = sbr.rel (0) target = $region45
    $region44: #{tpu_custom_call.1} parent=1 // pred_region
      %282 = dma.done [#allocation6], 64
    $region45: #{tpu_custom_call.1} parent=1 // pred_fallthru
      _
    %283 = vsyncpa [#allocation5], 1
    %284 = vsyncpa [#allocation8], 1
    %285 = vsyncpa [#allocation6], 1

</llo_original>
